<compile_context>
chip_gen: v5e
topology: v5e:2x2
jax: 0.10.0
libtpu: 0.0.40
codegen_flags: <defaults>
</compile_context>

<pallas_src>
import functools

import jax
import jax.numpy as jnp
from jax.experimental import pallas as pl
from jax.experimental.pallas import tpu as pltpu

MARGIN = 100.0
PAIRWISE_EPS = 1e-6  # F.pairwise_distance default eps


def _round_up(x: int, m: int) -> int:
    return (x + m - 1) // m * m


def _round_down8(x: int) -> int:
    return max(8, (x // 8) * 8)


def _choose_tb(batch: int, feat: int, itemsize: int) -> int:
    """Pick rows-per-grid-step from a byte budget (kernel is HBM-bound)."""
    # (a) HBM bytes per step: two (tb, feat) input tiles; target ~4 MiB.
    hbm_target = 4 * 1024 * 1024
    tb_hbm = max(8, hbm_target // max(2 * feat * itemsize, 1))

    # (b) VMEM footprint: 2 inputs x 2 pipeline buffers of (tb, lanes) in the
    #     input dtype plus ~2 f32 upcast temporaries.  A (tb, 64) tile still
    #     occupies 128 lanes in VMEM.  Keep under ~24 MiB so we sit well
    #     inside the explicit 48 MiB limit on every generation (v7x: 64 MiB
    #     physical per TC).
    lanes = max(feat, 128)
    vmem_budget = 24 * 1024 * 1024
    per_row = 2 * 2 * lanes * itemsize + 2 * lanes * 4
    tb_vmem = max(8, vmem_budget // per_row)

    tb = min(tb_hbm, tb_vmem)

    # (c) Ensure >= 2 roughly balanced blocks when the batch allows, so v7x's
    #     second TensorCore isn't idle (pure sequential loop on v5e/v6e).
    if batch > 8:
        tb = min(tb, _round_up(pl.cdiv(batch, 2), 8))

    # (d) Never exceed the (8-rounded) batch; sublane-aligned.
    tb = min(tb, _round_up(batch, 8))
    return _round_down8(tb)


def _make_kernel(margin: float, tb: int, b_actual: int):
    def kernel(o1_ref, o2_ref, lab_ref, out_ref):
        i = pl.program_id(0)

        o1 = o1_ref[...].astype(jnp.float32)             # (TB, D)
        o2 = o2_ref[...].astype(jnp.float32)             # (TB, D)
        lab = lab_ref[...].astype(jnp.float32)           # (TB, 1)

        diff = o1 - o2 + PAIRWISE_EPS                    # (TB, D)
        sq_sum = jnp.sum(diff * diff, axis=-1, keepdims=True)   # (TB, 1) = d^2
        d = jnp.sqrt(sq_sum)                             # euclidean distance
        md = margin - d
        # (1-l)*d^2 + l*|margin-d|^2  ==  (1-l)*sq_sum + l*(margin-d)^2
        term = (1.0 - lab) * sq_sum + lab * (md * md)    # (TB, 1)

        # Select (not multiply) away rows past B: the ragged last block's
        # undefined rows may hold garbage / NaN / Inf.
        row = i * tb + jax.lax.broadcasted_iota(jnp.int32, (tb, 1), 0)
        term = jnp.where(row < b_actual, term, 0.0)

        partial = jnp.sum(term)                          # scalar partial sum
        out_ref[...] = jnp.full((1, 1, 128), partial, dtype=jnp.float32)

    return kernel


@functools.partial(jax.jit, static_argnums=(3,))
def _contrastive_loss_impl(output1, output2, label, margin):
    B, D = output1.shape
    label = label.reshape(B, 1)

    itemsize = jnp.dtype(output1.dtype).itemsize
    tb = _choose_tb(B, D, itemsize)
    num_blocks = pl.cdiv(B, tb)

    kernel = _make_kernel(float(margin), tb, B)

    cost = pl.CostEstimate(
        flops=3 * B * D + 8 * B,
        transcendentals=B,  # one sqrt per row
        bytes_accessed=(2 * B * D * itemsize
                        + B * jnp.dtype(label.dtype).itemsize
                        + num_blocks * 128 * 4),
    )

    partials = pl.pallas_call(
        kernel,
        out_shape=jax.ShapeDtypeStruct((num_blocks, 1, 128), jnp.float32),
        grid=(num_blocks,),
        in_specs=[
            pl.BlockSpec((tb, D), lambda i: (i, 0)),
            pl.BlockSpec((tb, D), lambda i: (i, 0)),
            pl.BlockSpec((tb, 1), lambda i: (i, 0)),
        ],
        out_specs=pl.BlockSpec((1, 1, 128), lambda i: (i, 0, 0)),
        compiler_params=pltpu.CompilerParams(
            dimension_semantics=("parallel",),
            vmem_limit_bytes=48 * 1024 * 1024,
        ),
        cost_estimate=cost,
    )(output1, output2, label)

    # Final mean over the original batch, fused by XLA inside this jit.
    return jnp.sum(partials[:, 0, 0]) / jnp.float32(B)


def contrastive_loss(output1, output2, label, *, margin=MARGIN):
    return _contrastive_loss_impl(output1, output2, label, float(margin))


def _reference_loss(output1, output2, label, margin=MARGIN):
    # Pure-JAX reference mirroring the PyTorch forward exactly.
    diff = output1.astype(jnp.float32) - output2.astype(jnp.float32) + PAIRWISE_EPS
    d = jnp.sqrt(jnp.sum(diff * diff, axis=-1, keepdims=True))
    lab = label.reshape(-1, 1).astype(jnp.float32)
    return jnp.mean((1.0 - lab) * d**2 + lab * jnp.abs(margin - d) ** 2)


if __name__ == "__main__":
    key = jax.random.PRNGKey(0)
    k1, k2, k3, k4, k5, k6, k7, k8, k9 = jax.random.split(key, 9)

    # Small case matching the module's typical usage (siamese embeddings).
    B, D = 8, 32
    output1 = jax.random.normal(k1, (B, D), dtype=jnp.float32)
    output2 = jax.random.normal(k2, (B, D), dtype=jnp.float32)
    label = jax.random.bernoulli(k3, 0.5, (B, 1)).astype(jnp.float32)

    loss = jax.block_until_ready(contrastive_loss(output1, output2, label))
    ref = _reference_loss(output1, output2, label)
    assert jnp.allclose(loss, ref, rtol=1e-5, atol=1e-5), (loss, ref)

    # Ragged batch (B % 8 != 0): exercises the un-padded ragged last block.
    B1, D1 = 13, 32
    o1a = jax.random.normal(k7, (B1, D1), dtype=jnp.float32)
    o2a = jax.random.normal(k8, (B1, D1), dtype=jnp.float32)
    laba = jax.random.bernoulli(k9, 0.5, (B1, 1)).astype(jnp.float32)
    loss1 = jax.block_until_ready(contrastive_loss(o1a, o2a, laba))
    ref1 = _reference_loss(o1a, o2a, laba)
    assert jnp.allclose(loss1, ref1, rtol=1e-5, atol=1e-4), (loss1, ref1)

    # Larger case: 2 balanced blocks, second one ragged.
    B2, D2 = 600, 64
    o1b = jax.random.normal(k4, (B2, D2), dtype=jnp.float32)
    o2b = jax.random.normal(k5, (B2, D2), dtype=jnp.float32)
    labb = jax.random.bernoulli(k6, 0.5, (B2, 1)).astype(jnp.float32)
    loss2 = jax.block_until_ready(contrastive_loss(o1b, o2b, labb))
    ref2 = _reference_loss(o1b, o2b, labb)
    assert jnp.allclose(loss2, ref2, rtol=1e-4, atol=1e-3), (loss2, ref2)

    print("KERNEL_OK")
</pallas_src>

<mosaic_0001>
module attributes {stable_mosaic.version = 11 : i64} {
  func.func @kernel(%arg0: i32, %arg1: memref<8x32xf32, #tpu.memory_space<vmem>>, %arg2: memref<8x32xf32, #tpu.memory_space<vmem>>, %arg3: memref<8x1xf32, #tpu.memory_space<vmem>>, %arg4: memref<1x1x128xf32, #tpu.memory_space<vmem>>) attributes {dimension_semantics = [#tpu.dimension_semantics<parallel>], iteration_bounds = array<i64: 1>, scalar_prefetch = 0 : i64, scratch_operands = 0 : i64, tpu.core_type = #tpu.core_type<tc>, window_params = [{transform_indices = @transform_0, window_bounds = array<i64: 8, 32>}, {transform_indices = @transform_1, window_bounds = array<i64: 8, 32>}, {transform_indices = @transform_2, window_bounds = array<i64: 8, 1>}, {transform_indices = @transform_3, window_bounds = array<i64: 1, 1, 128>}]} {
    %c0 = arith.constant 0 : index
    %c0_0 = arith.constant 0 : index
    %0 = vector.load %arg1[%c0, %c0_0] : memref<8x32xf32, #tpu.memory_space<vmem>>, vector<8x32xf32>
    %c0_1 = arith.constant 0 : index
    %c0_2 = arith.constant 0 : index
    %1 = vector.load %arg2[%c0_1, %c0_2] : memref<8x32xf32, #tpu.memory_space<vmem>>, vector<8x32xf32>
    %c0_3 = arith.constant 0 : index
    %c0_4 = arith.constant 0 : index
    %2 = vector.load %arg3[%c0_3, %c0_4] : memref<8x1xf32, #tpu.memory_space<vmem>>, vector<8x1xf32>
    %3 = arith.subf %0, %1 : vector<8x32xf32>
    %cst = arith.constant 9.99999997E-7 : f32
    %4 = vector.broadcast %cst : f32 to vector<8x32xf32>
    %5 = arith.addf %3, %4 : vector<8x32xf32>
    %6 = arith.mulf %5, %5 : vector<8x32xf32>
    %cst_5 = arith.constant dense<0.000000e+00> : vector<8xf32>
    %7 = vector.multi_reduction <add>, %6, %cst_5 [1] : vector<8x32xf32> to vector<8xf32>
    %8 = vector.shape_cast %7 : vector<8xf32> to vector<8x1xf32>
    %9 = math.sqrt %8 : vector<8x1xf32>
    %cst_6 = arith.constant 1.000000e+02 : f32
    %10 = vector.broadcast %cst_6 : f32 to vector<8x1xf32>
    %11 = arith.subf %10, %9 : vector<8x1xf32>
    %cst_7 = arith.constant 1.000000e+00 : f32
    %12 = vector.broadcast %cst_7 : f32 to vector<8x1xf32>
    %13 = arith.subf %12, %2 : vector<8x1xf32>
    %14 = arith.mulf %13, %8 : vector<8x1xf32>
    %15 = arith.mulf %11, %11 : vector<8x1xf32>
    %16 = arith.mulf %2, %15 : vector<8x1xf32>
    %17 = arith.addf %14, %16 : vector<8x1xf32>
    %c8_i32 = arith.constant 8 : i32
    %18 = arith.muli %arg0, %c8_i32 : i32
    %19 = tpu.iota {dimensions = array<i32: 0>} : vector<8x1xi32>
    %20 = vector.broadcast %18 : i32 to vector<8x1xi32>
    %21 = arith.addi %20, %19 : vector<8x1xi32>
    %c8_i32_8 = arith.constant 8 : i32
    %22 = vector.broadcast %c8_i32_8 : i32 to vector<8x1xi32>
    %23 = arith.cmpi slt, %21, %22 : vector<8x1xi32>
    %cst_9 = arith.constant 0.000000e+00 : f32
    %24 = vector.broadcast %cst_9 : f32 to vector<8x1xf32>
    %25 = arith.select %23, %17, %24 : vector<8x1xi1>, vector<8x1xf32>
    %26 = vector.shape_cast %25 : vector<8x1xf32> to vector<1x8x1xf32>
    %cst_10 = arith.constant dense<0.000000e+00> : vector<1xf32>
    %27 = vector.multi_reduction <add>, %26, %cst_10 [1, 2] : vector<1x8x1xf32> to vector<1xf32>
    %28 = vector.shape_cast %27 : vector<1xf32> to vector<1x1x1xf32>
    %29 = vector.extract %28[0, 0, 0] : f32 from vector<1x1x1xf32>
    %30 = vector.broadcast %29 : f32 to vector<1x1x128xf32>
    %c0_11 = arith.constant 0 : index
    %c0_12 = arith.constant 0 : index
    %c0_13 = arith.constant 0 : index
    %31 = vector.load %arg4[%c0_11, %c0_12, %c0_13] : memref<1x1x128xf32, #tpu.memory_space<vmem>>, vector<1x1x128xf32>
    tpu.vector_store %arg4[%c0_11, %c0_12, %c0_13], %30 {strides = array<i32>} : memref<1x1x128xf32, #tpu.memory_space<vmem>>, vector<1x1x128xf32>,
    return
  }
  func.func @transform_0(%arg0: i32) -> (i32, i32) {
    %c0_i32 = arith.constant 0 : i32
    %c0_i32_0 = arith.constant 0 : i32
    return %arg0, %c0_i32 : i32, i32
  }
  func.func @transform_1(%arg0: i32) -> (i32, i32) {
    %c0_i32 = arith.constant 0 : i32
    %c0_i32_0 = arith.constant 0 : i32
    return %arg0, %c0_i32 : i32, i32
  }
  func.func @transform_2(%arg0: i32) -> (i32, i32) {
    %c0_i32 = arith.constant 0 : i32
    %c0_i32_0 = arith.constant 0 : i32
    return %arg0, %c0_i32 : i32, i32
  }
  func.func @transform_3(%arg0: i32) -> (i32, i32, i32) {
    %c0_i32 = arith.constant 0 : i32
    %c0_i32_0 = arith.constant 0 : i32
    %c0_i32_1 = arith.constant 0 : i32
    return %arg0, %c0_i32, %c0_i32_0 : i32, i32, i32
  }
}

</mosaic_0001>

<llo_original>
// kernel: _contrastive_loss_impl.1
$region0: #{_contrastive_loss_impl.1}
  #allocation0 [shape = 'u32[]', space=smem, size = 0x4, offset = 0x4, fixed_abs, tag = 'smem constant byte address 0x4 - core index']
  #allocation1 [shape = 'u32[72,128]{1,0:T(1,128)}', space=vmem, size = 0x9000, scoped, tag = 'internal scratch']
  %s0 = inlined_call_operand.vmem [shape: f32[8,32], index: 0, kind: input, shape index: {}]
  %s1 = inlined_call_operand.hbm [shape: f32[8,32], index: 1, kind: input, shape index: {}]
  %s2 = inlined_call_operand.vmem [shape: f32[8,1], index: 2, kind: input, shape index: {}]
  %s3 = inlined_call_operand.vmem [shape: f32[1,1,128], index: 3, kind: output, shape index: {}]
  %s4 = sld [smem:[#allocation0]]
  $region26: #{_contrastive_loss_impl.1} parent=0
    _
  %s6 = ssub.s32 1, %s4
  %s7 = scalar_select 0, %s6, %s4
  $region1: #{_contrastive_loss_impl.1} parent=0
    #allocation2 [shape = 'u8[4096]{0}', space=vmem, size = 0x1000, scoped, tag = 'input window, operand 1, single buffered']
    #allocation3 [shape = 's32[1]{0}', space=sflag, size = 0x4, scoped, tag = 'scoped memory for _contrastive_loss_impl.1']
    %8 = vsyncpa [#allocation3], 0
    // Predicated region
    $region2: #{_contrastive_loss_impl.1} parent=1 // pred_check
      _
    $region3: #{_contrastive_loss_impl.1} parent=1 // pred_check_branch
      %10 = sbr.rel (0) target = $region5
    $region4: #{_contrastive_loss_impl.1} parent=1 // pred_region
      _
    $region5: #{_contrastive_loss_impl.1} parent=1 // pred_fallthru
      _
    // Predicated region
    $region6: #{_contrastive_loss_impl.1} parent=1 // pred_check
      _
    $region7: #{_contrastive_loss_impl.1} parent=1 // pred_check_branch
      %12 = sbr.rel (0) target = $region9
    $region8: #{_contrastive_loss_impl.1} parent=1 // pred_region
      %14 = vsyncadd [#allocation3], 0
      %s16 = sshll.u32 %s1, 4
      %s17 = int_to_ptr.hbm [resolvable:$true] %s16
      %s18 = sshll.u32 [#allocation2], 4
      %s19 = int_to_ptr.vmem [resolvable:$true] %s18
      %21 = dma.hbm_to_vmem [thread:$0]  %s17, 128, %s19, [#allocation3]
    $region9: #{_contrastive_loss_impl.1} parent=1 // pred_fallthru
      _
    // Predicated region
    $region10: #{_contrastive_loss_impl.1} parent=1 // pred_check
      _
    $region11: #{_contrastive_loss_impl.1} parent=1 // pred_check_branch
      %23 = sbr.rel (0) target = $region13
    $region12: #{_contrastive_loss_impl.1} parent=1 // pred_region
      _
    $region13: #{_contrastive_loss_impl.1} parent=1 // pred_fallthru
      _
    // Predicated region
    $region14: #{_contrastive_loss_impl.1} parent=1 // pred_check
      _
    $region15: #{_contrastive_loss_impl.1} parent=1 // pred_check_branch
      %25 = sbr.rel (0) target = $region17
    $region16: #{_contrastive_loss_impl.1} parent=1 // pred_region
      %27 = dma.done [#allocation3], 128
    $region17: #{_contrastive_loss_impl.1} parent=1 // pred_fallthru
      _
    %v28 = vld [vmem:[%s0] sm:$0xff]
    %v29 = vld [vmem:[#allocation2] sm:$0xff]
    %v30 = vld [vmem:[%s2] sm:$0xff]
    %v31 = vsub.f32 %v28, %v29
    %v32 = vadd.f32 %v31, 1e-06
    %v33 = vmul.f32 %v32, %v32
    %vm34 = vcmask 261120
    %v35 = vsel %vm34, %v33, 0.0
    %36 = vadd.xlane.f32.xlu0 %v35
    %v37 = vpop.xlane.xlu0 %36
    %v38 = vrsqrt.pop %v37
    %v39 = vmul.f32 %v38, %v37
    %v40 = vmul.f32 %v39, %v38
    %v41 = vmul.f32 0.5, %v40
    %v42 = vsub.f32 1.5, %v41
    %v43 = vmul.f32 %v38, %v42
    %v44 = vmul.f32 %v37, %v43
    %vm45 = vcmp.eq.f32.partialorder %v37, inf
    %v46 = vsel %vm45, %v37, %v44
    %vm47 = vcmp.eq.f32.partialorder %v37, 0.0
    %v48 = vand.u32 %v37, 2147483648
    %v49 = vsel %vm47, %v48, %v46
    %v50 = vsub.f32 100.0, %v49
    %v51 = vsub.f32 1.0, %v30
    %v52 = vmul.f32 %v51, %v37
    %v53 = vmul.f32 %v50, %v50
    %v54 = vmul.f32 %v30, %v53
    %v55 = vadd.f32 %v52, %v54
    %s56 = smul.u32 0, 8
    %v57 = vlaneseq
    %v58 = vshrl.u32 %v57, 7
    %v59 = vstv %s56
    %v60 = vadd.s32 %v59, %v58
    %vm61 = vcmp.lt.s32.totalorder %v60, 8
    %v62 = vsel %vm61, %v55, 0.0
    %vm63 = vcmask 7168
    %v64 = vsel %vm63, %v62, 0.0
    %65 = vadd.xlane.f32.xlu0 %v64
    %v66 = vpop.xlane.xlu0 %65
    %v67 = vrot.slane %v66, 4
    %v68 = vadd.f32 %v66, %v67
    %v69 = vrot.slane %v68, 2
    %v70 = vadd.f32 %v68, %v69
    %v71 = vrot.slane %v70, 1
    %v72 = vadd.f32 %v70, %v71
    %s73 = vtos %v72
    %v74 = vstv %s73
    %75 = vst [vmem:[%s3] sm:$0x1] %v74
    // Predicated region
    $region18: #{_contrastive_loss_impl.1} parent=1 // pred_check
      _
    $region19: #{_contrastive_loss_impl.1} parent=1 // pred_check_branch
      %77 = sbr.rel (0) target = $region21
    $region20: #{_contrastive_loss_impl.1} parent=1 // pred_region
      _
    $region21: #{_contrastive_loss_impl.1} parent=1 // pred_fallthru
      _
    // Predicated region
    $region22: #{_contrastive_loss_impl.1} parent=1 // pred_check
      _
    $region23: #{_contrastive_loss_impl.1} parent=1 // pred_check_branch
      %79 = sbr.rel (0) target = $region25
    $region24: #{_contrastive_loss_impl.1} parent=1 // pred_region
      _
    $region25: #{_contrastive_loss_impl.1} parent=1 // pred_fallthru
      _
    %80 = vsyncpa [#allocation3], 1

</llo_original>
